<compile_context>
chip_gen: v6e
topology: v6e:2x2x1
jax: 0.10.0
libtpu: 0.0.40
codegen_flags: <defaults>
</compile_context>

<pallas_src>
import functools

import jax
import jax.numpy as jnp
from jax.experimental import pallas as pl
from jax.experimental.pallas import tpu as pltpu


# ----------------------------- bbox glue (plain JAX) -----------------------------

def _make_square(bbox, h, w):
    """Expand bbox to a square (side = max(w,h) of bbox), clamped to the image."""
    xmin, ymin, xmax, ymax = bbox[0], bbox[1], bbox[2], bbox[3]
    side = jnp.maximum(xmax - xmin, ymax - ymin)
    side = jnp.minimum(side, jnp.minimum(float(w), float(h)))
    cx = (xmin + xmax) * 0.5
    cy = (ymin + ymax) * 0.5
    nxmin = jnp.clip(cx - side * 0.5, 0.0, float(w) - side)
    nymin = jnp.clip(cy - side * 0.5, 0.0, float(h) - side)
    return jnp.stack([nxmin, nymin, nxmin + side, nymin + side])


def _make_min_size(bbox, min_h, min_w, h, w):
    """Ensure the (square) bbox side is at least max(min_h, min_w), clamped."""
    xmin, ymin, xmax, ymax = bbox[0], bbox[1], bbox[2], bbox[3]
    side = xmax - xmin
    min_side = jnp.minimum(float(max(min_h, min_w)),
                           jnp.minimum(float(w), float(h)))
    new_side = jnp.maximum(side, min_side)
    cx = (xmin + xmax) * 0.5
    cy = (ymin + ymax) * 0.5
    nxmin = jnp.clip(cx - new_side * 0.5, 0.0, float(w) - new_side)
    nymin = jnp.clip(cy - new_side * 0.5, 0.0, float(h) - new_side)
    return jnp.stack([nxmin, nymin, nxmin + new_side, nymin + new_side])


def _bilinear_weights(out_size, in_size, lo, hi):
    """(out_size, in_size) bilinear matrix resampling [lo, hi) -> out_size.

    align_corners=False convention.  Weights are exactly zero outside
    [floor(lo), ceil(hi)-1], which is what makes crop-window tile skipping and
    zero-padding of the tiled weight tensors numerically inert.
    """
    o = jnp.arange(out_size, dtype=jnp.float32)[:, None]
    r = jnp.arange(in_size, dtype=jnp.float32)[None, :]
    span = hi - lo
    s = (o + 0.5) * (span / float(out_size)) - 0.5 + lo
    s = jnp.clip(s, jnp.maximum(lo, 0.0),
                 jnp.minimum(hi - 1.0, float(in_size - 1)))
    return jnp.maximum(0.0, 1.0 - jnp.abs(s - r))          # (out, in)


# ----------------------------- tiling helpers -----------------------------

def _vmem_capacity_bytes():
    try:
        return int(pltpu.get_tpu_info().vmem_capacity_bytes)
    except Exception:
        return 64 << 20          # conservative (v7x-sized) fallback


def _pick_channel_block(c):
    """Channel fusion factor CB. Prefer an EVEN number of channel grid steps so
    the two v7x TensorCores stay balanced on the 'parallel' axis; else >= 2."""
    divs = [d for d in range(1, c + 1) if c % d == 0]
    even = [d for d in divs if (c // d) >= 2 and (c // d) % 2 == 0]
    if even:
        return max(even)
    multi = [d for d in divs if (c // d) >= 2]
    return max(multi) if multi else c
    # TODO(synk): for odd C (e.g. RGB) a second parallel axis over OH blocks
    # would give a balanced 2-core split on v7x; single parallel axis kept.


def _pick_tile(dim, cap):
    """Full extent if small, else a 128-multiple tile (image block rule:
    last dim %128 / second-minor %8 unless equal to the full dim)."""
    if dim <= cap:
        return dim
    return max(128, (cap // 128) * 128)


def _vmem_estimate(cb, th, tw, nh, nw, oh, ow, in_item, out_item, comp_item):
    lane = 128
    ow_p = max(ow, lane)
    th_p = max(th, lane)
    return (2 * cb * th * tw * in_item            # image tile, double buffered
            + 2 * nh * oh * th_p * 4              # resident WyT (2 buffers)
            + 2 * nw * tw * ow_p * 4              # resident WxT (2 buffers)
            + 2 * cb * oh * ow_p * out_item       # output block buffers
            + cb * oh * ow_p * 4                  # f32 accumulator scratch
            + cb * th * tw * (in_item + comp_item)  # masked + cast image copies
            + cb * th * ow_p * 4                  # column-pass intermediate t
            + cb * oh * th * 4)                   # broadcast Wy operand


# ----------------------------- Pallas kernel -----------------------------

def _crop_resize_kernel(info_ref, wy_ref, wx_ref, img_ref, out_ref, acc_ref, *,
                        compute_dtype, img_h, img_w, mask_h, mask_w):
    """One grid step = one channel block x one (H, W) image tile.

    info_ref : SMEM i32[4] = [y0_block, n_live_h, x0_block, n_live_w]
    wy_ref   : VMEM f32[nH, OH, TH]  row weights, per-H-block slices (resident)
    wx_ref   : VMEM f32[nW, TW, OW]  col weights, per-W-block slices (resident)
    img_ref  : VMEM   [CB, TH, TW]   image tile (crop-window block)
    out_ref  : VMEM   [CB, OH, OW]
    acc_ref  : VMEM f32[CB, OH, OW]  accumulator over both reduction axes
    """
    kh = pl.program_id(1)
    kw = pl.program_id(2)
    n_live_h = info_ref[1]
    n_live_w = info_ref[3]

    @pl.when((kh == 0) & (kw == 0))
    def _init():
        acc_ref[...] = jnp.zeros_like(acc_ref)

    # Only tiles overlapping the crop window do any work; trailing (dead) grid
    # steps re-reference the last live block (no new DMA) and fall through.
    @pl.when((kh < n_live_h) & (kw < n_live_w))
    def _compute():
        cb, th, tw = img_ref.shape
        oh = wy_ref.shape[1]
        ow = wx_ref.shape[2]

        h_blk = jnp.minimum(info_ref[0] + kh, info_ref[0] + n_live_h - 1)
        w_blk = jnp.minimum(info_ref[2] + kw, info_ref[2] + n_live_w - 1)

        img = img_ref[...]
        # Zero the out-of-image tail of edge tiles: their Wy/Wx weights are
        # zero, but the un-DMA'd tail of the VMEM buffer is undefined.
        if mask_h or mask_w:
            valid = None
            if mask_h:
                rows = jax.lax.broadcasted_iota(jnp.int32, (th, tw), 0)
                valid = rows + h_blk * th < img_h
            if mask_w:
                cols = jax.lax.broadcasted_iota(jnp.int32, (th, tw), 1)
                cvalid = cols + w_blk * tw < img_w
                valid = cvalid if valid is None else (valid & cvalid)
            img = jnp.where(valid[None, :, :], img, jnp.zeros_like(img))

        # Column pass: ONE channel-fused MXU matmul, M = CB*TH, K = TW, N = OW.
        wx_tile = wx_ref[w_blk].astype(compute_dtype)            # (TW, OW)
        img2d = img.reshape(cb * th, tw).astype(compute_dtype)
        t = jnp.dot(img2d, wx_tile,
                    preferred_element_type=jnp.float32)          # (CB*TH, OW) f32
        t = t.reshape(cb, th, ow)                                # kept in f32

        # Row pass (f32; ~OH/TW of the column-pass FLOPs): one batched matmul
        # instead of a per-channel Python loop.
        wy_tile = wy_ref[h_blk]                                  # (OH, TH) f32
        wy_b = jnp.broadcast_to(wy_tile[None], (cb, oh, th))
        acc_ref[...] += jax.lax.dot_general(
            wy_b, t, (((2,), (1,)), ((0,), (0,))),
            preferred_element_type=jnp.float32)                  # (CB, OH, OW)

    @pl.when((kh == pl.num_programs(1) - 1) & (kw == pl.num_programs(2) - 1))
    def _store():
        out_ref[...] = acc_ref[...].astype(out_ref.dtype)

    # TODO(synk): when out dtype is f32 the accumulator could live directly in
    # out_ref (index_map already holds it resident) to save VMEM on v7x.
    # TODO(synk): a lane-dense (OH, C*OW) output slab (single unmasked store)
    # conflicts with blocking the channel axis for megacore; natural (C,OH,OW)
    # layout kept.


# ----------------------------- module wrapper -----------------------------

class SquareCropPallas:
    """Pallas equivalent of SquareCrop(size=..., p=1.0)."""
    # TODO(synk): p < 1.0 draws np.random at call time (host-side, data-dependent
    # control flow) — only the deterministic p == 1.0 path is implemented.
    # TODO(synk): no antialiasing on large downscales (plain 2-tap bilinear).

    def __init__(self, size, p=1.0, compute_dtype=jnp.float32):
        assert isinstance(size, (list, tuple)) and len(size) == 2
        assert p >= 1.0, "only the always-crop path is supported"
        self.size = tuple(size)             # (out_h, out_w)
        self.p = p
        self.compute_dtype = compute_dtype  # bf16 for v6e/v7x MXU, f32 exact

    def __call__(self, img, bbox):
        # img: [C, H, W]   bbox: f32[4] = (xmin, ymin, xmax, ymax)
        # NOTE: bf16 HBM input is accepted as-is (halves the dominant read);
        # no wrapper-side cast is ever added.
        C, H, W = img.shape
        out_h, out_w = self.size

        bbox = jnp.asarray(bbox, jnp.float32)
        bbox = _make_square(bbox, H, W)
        bbox = _make_min_size(bbox, out_h, out_w, H, W)
        bbox = jnp.floor(bbox)
        # TODO(synk): torchvision crops with int(top)/int(left)/int(h)/int(w);
        # flooring all four corners can differ by <=1px of effective crop side.

        # ---------------- static tiling (VMEM-capacity driven) ----------------
        vmem_cap = _vmem_capacity_bytes()           # 128 MiB v5e/v6e, 64 MiB v7x
        budget = (vmem_cap * 3) // 4                # ~48 MiB v7x, ~96 MiB v5e/v6e
        big_vmem = vmem_cap >= (96 << 20)
        th = _pick_tile(H, 512 if big_vmem else 256)
        tw = _pick_tile(W, 1024 if big_vmem else 512)
        cb = _pick_channel_block(C)

        in_item = jnp.dtype(img.dtype).itemsize
        comp_item = jnp.dtype(self.compute_dtype).itemsize

        def est(cb_, th_, tw_):
            return _vmem_estimate(cb_, th_, tw_, pl.cdiv(H, th_), pl.cdiv(W, tw_),
                                  out_h, out_w, in_item, in_item, comp_item)

        def shrink(t):
            return max(128, ((t // 2) // 128) * 128)

        for _ in range(32):                          # belt-and-braces fit loop
            if est(cb, th, tw) + (8 << 20) <= budget:
                break
            if tw > 128 and shrink(tw) < tw:
                tw = shrink(tw)
            elif th > 128 and shrink(th) < th:
                th = shrink(th)
            elif cb > 1:
                cb = max([d for d in range(1, cb) if C % d == 0] or [1])
            else:
                break

        n_h = pl.cdiv(H, th)                         # physical H blocks
        n_w = pl.cdiv(W, tw)                         # physical W blocks
        side_max = min(H, W)                         # square crop side bound
        g_h = min(n_h, pl.cdiv(side_max, th) + 1)    # max blocks a crop can span
        g_w = min(n_w, pl.cdiv(side_max, tw) + 1)
        mask_h = (H % th) != 0
        mask_w = (W % tw) != 0

        # --------- dynamic bbox -> resample weights + live-block window ---------
        wy = _bilinear_weights(out_h, H, bbox[1], bbox[3])       # (OH, H)
        wx = _bilinear_weights(out_w, W, bbox[0], bbox[2])       # (OW, W)
        wy = jnp.pad(wy, ((0, 0), (0, n_h * th - H)))            # zero-pad: inert
        wx = jnp.pad(wx, ((0, 0), (0, n_w * tw - W)))
        wy_t = jnp.transpose(wy.reshape(out_h, n_h, th), (1, 0, 2))  # (nH, OH, TH)
        wx_t = jnp.transpose(wx.reshape(out_w, n_w, tw), (1, 2, 0))  # (nW, TW, OW)

        ymin = bbox[1].astype(jnp.int32)
        xmin = bbox[0].astype(jnp.int32)
        ylast = jnp.maximum(jnp.minimum(bbox[3], float(H)).astype(jnp.int32) - 1, ymin)
        xlast = jnp.maximum(jnp.minimum(bbox[2], float(W)).astype(jnp.int32) - 1, xmin)
        y0_blk = ymin // th
        x0_blk = xmin // tw
        n_live_h = jnp.clip(ylast // th - y0_blk + 1, 1, g_h)
        n_live_w = jnp.clip(xlast // tw - x0_blk + 1, 1, g_w)
        info = jnp.stack([y0_blk, n_live_h, x0_blk, n_live_w]).astype(jnp.int32)

        # ------------- index maps with crop-window block skipping -------------
        def img_index(i, kh, kw, info_ref):
            y0, nlh = info_ref[0], info_ref[1]
            x0, nlw = info_ref[2], info_ref[3]
            h = jnp.minimum(y0 + kh, y0 + nlh - 1)
            w_live = jnp.minimum(x0 + kw, x0 + nlw - 1)
            # Pin dead rows to the last live column so trailing steps never
            # issue a new DMA (repeated block index => no re-fetch).
            w = jnp.where(kh < nlh, w_live, x0 + nlw - 1)
            return (i, h, w)

        kernel = functools.partial(
            _crop_resize_kernel, compute_dtype=self.compute_dtype,
            img_h=H, img_w=W, mask_h=mask_h, mask_w=mask_w)

        vmem_limit = int(min(budget,
                             max(2 * est(cb, th, tw) + (8 << 20), 32 << 20)))

        out = pl.pallas_call(
            kernel,
            out_shape=jax.ShapeDtypeStruct((C, out_h, out_w), img.dtype),
            grid_spec=pltpu.PrefetchScalarGridSpec(
                num_scalar_prefetch=1,
                grid=(C // cb, g_h, g_w),
                in_specs=[
                    # Weight blocks are resident (fetched once), selected
                    # in-kernel by dynamic block index -> no per-step re-fetch.
                    pl.BlockSpec((n_h, out_h, th), lambda i, kh, kw, info: (0, 0, 0)),
                    pl.BlockSpec((n_w, tw, out_w), lambda i, kh, kw, info: (0, 0, 0)),
                    pl.BlockSpec((cb, th, tw), img_index),
                ],
                out_specs=pl.BlockSpec((cb, out_h, out_w),
                                       lambda i, kh, kw, info: (i, 0, 0)),
                scratch_shapes=[pltpu.VMEM((cb, out_h, out_w), jnp.float32)],
            ),
            compiler_params=pltpu.CompilerParams(
                dimension_semantics=("parallel", "arbitrary", "arbitrary"),
                vmem_limit_bytes=vmem_limit,
            ),
        )(info, wy_t, wx_t, img)
        return out


# ----------------------------- pure-JAX reference -----------------------------

def _reference(img, bbox, size):
    C, H, W = img.shape
    out_h, out_w = size
    b = jnp.floor(_make_min_size(
        _make_square(jnp.asarray(bbox, jnp.float32), H, W), out_h, out_w, H, W))
    wy = _bilinear_weights(out_h, H, b[1], b[3])   # (OH, H)
    wx = _bilinear_weights(out_w, W, b[0], b[2])   # (OW, W)
    return jnp.einsum('oh,chw,pw->cop', wy, img, wx,
                      precision=jax.lax.Precision.HIGHEST)


# ----------------------------- main -----------------------------

if __name__ == "__main__":
    key = jax.random.PRNGKey(0)
    k1, k2 = jax.random.split(key)

    # --- small sanity test (single tile, no skipping) ---
    C, H, W = 4, 16, 16
    img = jax.random.uniform(k1, (C, H, W), dtype=jnp.float32)
    bbox = jnp.array([2.0, 3.0, 11.0, 8.0], dtype=jnp.float32)  # xmin,ymin,xmax,ymax

    ref = _reference(img, bbox, (8, 8))

    mod_f32 = SquareCropPallas(size=(8, 8), p=1.0)
    out = jax.block_until_ready(mod_f32(img, bbox))
    assert out.shape == (C, 8, 8), out.shape
    assert jnp.allclose(out, ref, atol=1e-5, rtol=1e-5), "f32 mismatch (small)"

    mod_bf16 = SquareCropPallas(size=(8, 8), p=1.0, compute_dtype=jnp.bfloat16)
    out_bf = jax.block_until_ready(mod_bf16(img, bbox))
    assert out_bf.shape == (C, 8, 8), out_bf.shape
    assert jnp.allclose(out_bf, ref, atol=3e-2, rtol=3e-2), "bf16 mismatch (small)"

    # --- moderate test: multi-tile grid, crop-window skipping, edge masks ---
    C2, H2, W2 = 3, 600, 1100
    img2 = jax.random.uniform(k2, (C2, H2, W2), dtype=jnp.float32)
    bbox2 = jnp.array([700.0, 280.0, 1050.0, 590.0], dtype=jnp.float32)
    ref2 = _reference(img2, bbox2, (64, 48))
    mod2 = SquareCropPallas(size=(64, 48), p=1.0)
    out2 = jax.block_until_ready(mod2(img2, bbox2))
    assert out2.shape == (C2, 64, 48), out2.shape
    assert jnp.allclose(out2, ref2, atol=1e-4, rtol=1e-4), "f32 mismatch (tiled)"

    print("KERNEL_OK")
</pallas_src>

<mosaic_0001>
module attributes {stable_mosaic.version = 11 : i64} {
  func.func @_crop_resize_kernel(%arg0: i32, %arg1: i32, %arg2: i32, %arg3: memref<4xi32, #tpu.memory_space<smem>>, %arg4: memref<1x8x16xf32, #tpu.memory_space<vmem>>, %arg5: memref<1x16x8xf32, #tpu.memory_space<vmem>>, %arg6: memref<2x16x16xf32, #tpu.memory_space<vmem>>, %arg7: memref<2x8x8xf32, #tpu.memory_space<vmem>>, %arg8: memref<2x8x8xf32, #tpu.memory_space<vmem>>) attributes {dimension_semantics = [#tpu.dimension_semantics<parallel>, #tpu.dimension_semantics<arbitrary>, #tpu.dimension_semantics<arbitrary>], iteration_bounds = array<i64: 2, 1, 1>, scalar_prefetch = 1 : i64, scratch_operands = 1 : i64, tpu.core_type = #tpu.core_type<tc>, window_params = [{pipeline_mode = #tpu.pipeline_mode<synchronous>, transform_indices = @transform_0, window_bounds = array<i64: 1, 8, 16>}, {pipeline_mode = #tpu.pipeline_mode<synchronous>, transform_indices = @transform_1, window_bounds = array<i64: 1, 16, 8>}, {transform_indices = @transform_2, window_bounds = array<i64: 2, 16, 16>}, {transform_indices = @transform_3, window_bounds = array<i64: 2, 8, 8>}]} {
    %c1 = arith.constant 1 : index
    %0 = memref.load %arg3[%c1] : memref<4xi32, #tpu.memory_space<smem>>
    %c3 = arith.constant 3 : index
    %1 = memref.load %arg3[%c3] : memref<4xi32, #tpu.memory_space<smem>>
    %c0_i32 = arith.constant 0 : i32
    %2 = arith.cmpi eq, %arg1, %c0_i32 : i32
    %c0_i32_0 = arith.constant 0 : i32
    %3 = arith.cmpi eq, %arg2, %c0_i32_0 : i32
    %4 = arith.andi %2, %3 : i1
    %5 = arith.extui %4 : i1 to i32
    %c0_i32_1 = arith.constant 0 : i32
    %6 = arith.cmpi ne, %5, %c0_i32_1 : i32
    scf.if %6 {
      %cst = arith.constant 0.000000e+00 : f32
      %17 = vector.broadcast %cst : f32 to vector<2x8x8xf32>
      %c0 = arith.constant 0 : index
      %c0_6 = arith.constant 0 : index
      %c0_7 = arith.constant 0 : index
      %18 = vector.load %arg8[%c0, %c0_6, %c0_7] : memref<2x8x8xf32, #tpu.memory_space<vmem>>, vector<2x8x8xf32>
      tpu.vector_store %arg8[%c0, %c0_6, %c0_7], %17 {strides = array<i32>} : memref<2x8x8xf32, #tpu.memory_space<vmem>>, vector<2x8x8xf32>,
    } else {
    }
    %7 = arith.cmpi slt, %arg1, %0 : i32
    %8 = arith.cmpi slt, %arg2, %1 : i32
    %9 = arith.andi %7, %8 : i1
    %10 = arith.extui %9 : i1 to i32
    %c0_i32_2 = arith.constant 0 : i32
    %11 = arith.cmpi ne, %10, %c0_i32_2 : i32
    scf.if %11 {
      %c0 = arith.constant 0 : index
      %17 = memref.load %arg3[%c0] : memref<4xi32, #tpu.memory_space<smem>>
      %18 = arith.addi %17, %arg1 : i32
      %c0_6 = arith.constant 0 : index
      %19 = memref.load %arg3[%c0_6] : memref<4xi32, #tpu.memory_space<smem>>
      %20 = arith.addi %19, %0 : i32
      %c1_i32 = arith.constant 1 : i32
      %21 = arith.subi %20, %c1_i32 : i32
      %22 = arith.minsi %18, %21 : i32
      %c2 = arith.constant 2 : index
      %23 = memref.load %arg3[%c2] : memref<4xi32, #tpu.memory_space<smem>>
      %24 = arith.addi %23, %arg2 : i32
      %c2_7 = arith.constant 2 : index
      %25 = memref.load %arg3[%c2_7] : memref<4xi32, #tpu.memory_space<smem>>
      %26 = arith.addi %25, %1 : i32
      %c1_i32_8 = arith.constant 1 : i32
      %27 = arith.subi %26, %c1_i32_8 : i32
      %28 = arith.minsi %24, %27 : i32
      %c0_9 = arith.constant 0 : index
      %c0_10 = arith.constant 0 : index
      %c0_11 = arith.constant 0 : index
      %29 = vector.load %arg6[%c0_9, %c0_10, %c0_11] : memref<2x16x16xf32, #tpu.memory_space<vmem>>, vector<2x16x16xf32>
      %30 = arith.index_cast %28 : i32 to index
      %c0_12 = arith.constant 0 : index
      %c0_13 = arith.constant 0 : index
      %31 = vector.load %arg5[%30, %c0_12, %c0_13] : memref<1x16x8xf32, #tpu.memory_space<vmem>>, vector<1x16x8xf32>
      %32 = vector.shape_cast %31 : vector<1x16x8xf32> to vector<16x8xf32>
      %33 = vector.shape_cast %29 : vector<2x16x16xf32> to vector<32x16xf32>
      %cst = arith.constant dense<0.000000e+00> : vector<32x8xf32>
      %34 = tpu.matmul %33, %32, %cst {dimension_numbers = #tpu.dot_dimension_numbers<[1], [0], [0], [1], [0, 0, 1, 1], [], []>} : vector<32x16xf32>, vector<16x8xf32>, vector<32x8xf32> -> vector<32x8xf32>
      %35 = vector.shape_cast %34 : vector<32x8xf32> to vector<2x16x8xf32>
      %36 = arith.index_cast %22 : i32 to index
      %c0_14 = arith.constant 0 : index
      %c0_15 = arith.constant 0 : index
      %37 = vector.load %arg4[%36, %c0_14, %c0_15] : memref<1x8x16xf32, #tpu.memory_space<vmem>>, vector<1x8x16xf32>
      %38 = vector.shape_cast %37 : vector<1x8x16xf32> to vector<8x16xf32>
      %39 = vector.shape_cast %38 : vector<8x16xf32> to vector<1x8x16xf32>
      %40 = vector.shape_cast %39 : vector<1x8x16xf32> to vector<1x8x16xf32>
      %41 = vector.broadcast %40 : vector<1x8x16xf32> to vector<2x8x16xf32>
      %c0_16 = arith.constant 0 : index
      %c0_17 = arith.constant 0 : index
      %c0_18 = arith.constant 0 : index
      %42 = vector.load %arg8[%c0_16, %c0_17, %c0_18] : memref<2x8x8xf32, #tpu.memory_space<vmem>>, vector<2x8x8xf32>
      %cst_19 = arith.constant dense<0.000000e+00> : vector<2x8x8xf32>
      %43 = tpu.matmul %41, %35, %cst_19 {dimension_numbers = #tpu.dot_dimension_numbers<[2], [1], [1], [2], [0, 0, 0, 1, 1, 2], [0], [0]>} : vector<2x8x16xf32>, vector<2x16x8xf32>, vector<2x8x8xf32> -> vector<2x8x8xf32>
      %44 = arith.addf %42, %43 : vector<2x8x8xf32>
      %c0_20 = arith.constant 0 : index
      %c0_21 = arith.constant 0 : index
      %c0_22 = arith.constant 0 : index
      %45 = vector.load %arg8[%c0_20, %c0_21, %c0_22] : memref<2x8x8xf32, #tpu.memory_space<vmem>>, vector<2x8x8xf32>
      tpu.vector_store %arg8[%c0_20, %c0_21, %c0_22], %44 {strides = array<i32>} : memref<2x8x8xf32, #tpu.memory_space<vmem>>, vector<2x8x8xf32>,
    } else {
    }
    %c0_i32_3 = arith.constant 0 : i32
    %12 = arith.cmpi eq, %arg1, %c0_i32_3 : i32
    %c0_i32_4 = arith.constant 0 : i32
    %13 = arith.cmpi eq, %arg2, %c0_i32_4 : i32
    %14 = arith.andi %12, %13 : i1
    %15 = arith.extui %14 : i1 to i32
    %c0_i32_5 = arith.constant 0 : i32
    %16 = arith.cmpi ne, %15, %c0_i32_5 : i32
    scf.if %16 {
      %c0 = arith.constant 0 : index
      %c0_6 = arith.constant 0 : index
      %c0_7 = arith.constant 0 : index
      %17 = vector.load %arg8[%c0, %c0_6, %c0_7] : memref<2x8x8xf32, #tpu.memory_space<vmem>>, vector<2x8x8xf32>
      %c0_8 = arith.constant 0 : index
      %c0_9 = arith.constant 0 : index
      %c0_10 = arith.constant 0 : index
      %18 = vector.load %arg7[%c0_8, %c0_9, %c0_10] : memref<2x8x8xf32, #tpu.memory_space<vmem>>, vector<2x8x8xf32>
      tpu.vector_store %arg7[%c0_8, %c0_9, %c0_10], %17 {strides = array<i32>} : memref<2x8x8xf32, #tpu.memory_space<vmem>>, vector<2x8x8xf32>,
    } else {
    }
    return
  }
  func.func @transform_0(%arg0: i32, %arg1: i32, %arg2: i32, %arg3: memref<4xi32, #tpu.memory_space<smem>>) -> (i32, i32, i32) {
    %c0_i32 = arith.constant 0 : i32
    %c0_i32_0 = arith.constant 0 : i32
    %c0_i32_1 = arith.constant 0 : i32
    %c0_i32_2 = arith.constant 0 : i32
    return %c0_i32, %c0_i32_0, %c0_i32_1 : i32, i32, i32
  }
  func.func @transform_1(%arg0: i32, %arg1: i32, %arg2: i32, %arg3: memref<4xi32, #tpu.memory_space<smem>>) -> (i32, i32, i32) {
    %c0_i32 = arith.constant 0 : i32
    %c0_i32_0 = arith.constant 0 : i32
    %c0_i32_1 = arith.constant 0 : i32
    %c0_i32_2 = arith.constant 0 : i32
    return %c0_i32, %c0_i32_0, %c0_i32_1 : i32, i32, i32
  }
  func.func @transform_2(%arg0: i32, %arg1: i32, %arg2: i32, %arg3: memref<4xi32, #tpu.memory_space<smem>>) -> (i32, i32, i32) {
    %c0 = arith.constant 0 : index
    %0 = memref.load %arg3[%c0] : memref<4xi32, #tpu.memory_space<smem>>
    %c1 = arith.constant 1 : index
    %1 = memref.load %arg3[%c1] : memref<4xi32, #tpu.memory_space<smem>>
    %c2 = arith.constant 2 : index
    %2 = memref.load %arg3[%c2] : memref<4xi32, #tpu.memory_space<smem>>
    %c3 = arith.constant 3 : index
    %3 = memref.load %arg3[%c3] : memref<4xi32, #tpu.memory_space<smem>>
    %4 = arith.addi %0, %arg1 : i32
    %5 = arith.addi %0, %1 : i32
    %c1_i32 = arith.constant 1 : i32
    %6 = arith.subi %5, %c1_i32 : i32
    %7 = arith.minsi %4, %6 : i32
    %8 = arith.addi %2, %arg2 : i32
    %9 = arith.addi %2, %3 : i32
    %c1_i32_0 = arith.constant 1 : i32
    %10 = arith.subi %9, %c1_i32_0 : i32
    %11 = arith.minsi %8, %10 : i32
    %12 = arith.cmpi slt, %arg1, %1 : i32
    %13 = arith.addi %2, %3 : i32
    %c1_i32_1 = arith.constant 1 : i32
    %14 = arith.subi %13, %c1_i32_1 : i32
    %15 = arith.select %12, %11, %14 : i32
    %c0_i32 = arith.constant 0 : i32
    return %arg0, %7, %15 : i32, i32, i32
  }
  func.func @transform_3(%arg0: i32, %arg1: i32, %arg2: i32, %arg3: memref<4xi32, #tpu.memory_space<smem>>) -> (i32, i32, i32) {
    %c0_i32 = arith.constant 0 : i32
    %c0_i32_0 = arith.constant 0 : i32
    %c0_i32_1 = arith.constant 0 : i32
    return %arg0, %c0_i32, %c0_i32_0 : i32, i32, i32
  }
}

</mosaic_0001>

<llo_original>
// kernel: tpu_custom_call.1
$region0: #{tpu_custom_call.1}
  #allocation0 [shape = 'u32[]', space=smem, size = 0x4, offset = 0x4, fixed_abs, tag = 'smem constant byte address 0x4 - core index']
  #allocation1 [shape = 'u32[144,128]{1,0:T(1,128)}', space=vmem, size = 0x12000, scoped, tag = 'internal scratch']
  #allocation2 [shape = 'f32[2,8,8]{2,1,0:T(8,128)}', space=vmem, size = 0x2000, scoped, tag = 'scratch operand']
  #allocation3 [shape = 's32[1]{0}', space=sflag, size = 0x4, scoped, tag = 'scoped memory for tpu_custom_call.1']
  #allocation4 [shape = 'u8[512]{0}', space=smem, size = 0x200, scoped, tag = 'prefetched SMEM operand 0']
  %s0 = inlined_call_operand.vmem [shape: s32[4], index: 0, kind: input, shape index: {}]
  %s1 = inlined_call_operand.vmem [shape: f32[1,8,16], index: 1, kind: input, shape index: {}]
  %s2 = inlined_call_operand.vmem [shape: f32[1,16,8], index: 2, kind: input, shape index: {}]
  %s3 = inlined_call_operand.hbm [shape: f32[4,16,16], index: 3, kind: input, shape index: {}]
  %s4 = inlined_call_operand.hbm [shape: f32[4,8,8], index: 4, kind: output, shape index: {}]
  %s5 = sld [smem:[#allocation0]]
  $region61: #{tpu_custom_call.1} parent=0
    _
  %s7 = ssub.s32 1, %s5
  %s8 = scalar_select 0, %s7, %s5
  %s9 = sshll.u32 %s0, 4
  %s10 = int_to_ptr.vmem [resolvable:$true] %s9
  %12 = dma.vmem_to_smem %s10, 16, [#allocation4], [#allocation3]
  %13 = dma.done [#allocation3], 16
  %14 = sfence
  $region1: #{tpu_custom_call.1} parent=0
    #allocation5 [shape = 'u8[32768]{0}', space=vmem, size = 0x8000, scoped, tag = 'input window, operand 3']
    #allocation6 [shape = 's32[2]{0}', space=sflag, size = 0x8, scoped, tag = 'scoped memory for tpu_custom_call.1']
    #allocation7 [shape = 's32[2]{0}', space=sflag, size = 0x8, scoped, tag = 'scoped memory for tpu_custom_call.1']
    #allocation8 [shape = 'u8[16384]{0}', space=vmem, size = 0x4000, scoped, tag = 'output window, operand 0']
    %15 = vsyncpa [#allocation6], 0
    %s16 = scalar_lea.sflag [#allocation6], 1
    %17 = vsyncpa %s16, 0
    %18 = vsyncpa [#allocation7], 0
    %s19 = scalar_lea.sflag [#allocation7], 1
    %20 = vsyncpa %s19, 0
    loop: start=0, step=1, limit=4
    $region2: #{tpu_custom_call.1} parent=1 // loop_pre_header
      _
    $region3: #{tpu_custom_call.1} parent=1 // loop_header
      %s22 = sphi 0, %s26
      %p23 = scmp.ge.s32.totalorder %s22, 4
      %s29 = sphi 0, %s48
      %s30 = sphi 0, %s44
      %s31 = sphi 0, %s40
      %s32 = sphi 0, %s29
      %s33 = sphi 0, %s30
      %s34 = sphi 0, %s31
      %s35 = sphi 0, %s32
      %s36 = sphi 0, %s33
      %s37 = sphi 0, %s34
      %s49 = sphi 0, %s49
      %s51 = sphi 0, %s49
      %s52 = sphi 0, %s51
      %s66 = sphi 0, %s52
      %s70 = sphi 0, %s70
      %s72 = sphi 0, %s70
      %s73 = sphi 0, %s72
      %s87 = sphi 0, %s73
      %s129 = sphi 0, %s131
      %s132 = sphi 0, %s129
      %s133 = sphi 0, %s132
      %s149 = sphi 0, %s133
      %s155 = sphi 0, %s157
      %s158 = sphi 0, %s155
      %s159 = sphi 0, %s158
      %s175 = sphi 0, %s159
    $region4: #{tpu_custom_call.1} parent=1 // loop_header_branch
      %25 = sbr.rel (%p23) target = $region8
    $region5: #{tpu_custom_call.1} parent=1 // loop_body
      %s27 = ssub.s32 %s22, 1
      %s28 = ssub.s32 %s22, 2
      %s38 = sadd.s32 1, %s31
      %p39 = scmp.ge.s32.totalorder %s38, 1
      %s40 = scalar_select %p39, 0, %s38
      %s41 = sadd.s32 1, %s30
      %s42 = scalar_select %p39, %s41, %s30
      %p43 = scmp.ge.s32.totalorder %s42, 1
      %s44 = scalar_select %p43, 0, %s42
      %s45 = sadd.s32 1, %s29
      %s46 = scalar_select %p43, %s45, %s29
      %p47 = scmp.ge.s32.totalorder %s46, 2
      %s48 = scalar_select %p47, 0, %s46
      %s50 = sadd.s32 %s49, 1
      %p53 = scmp.eq.s32.totalorder %s22, 1
      %p54 = scmp.ne.s32.totalorder %s49, %s51
      %p55 = scmp.eq.s32.totalorder %s22, 0
      %p56 = por %p54, %p55
      %p57 = scmp.ne.s32.totalorder %s49, %s51
      %p58 = scmp.eq.s32.totalorder %s27, 1
      %p59 = por %p57, %p58
      %p60 = scmp.ne.s32.totalorder %s51, %s52
      %p61 = scmp.eq.s32.totalorder %s27, 0
      %p62 = por %p60, %p61
      %p63 = scmp.ne.s32.totalorder %s51, %s52
      %p64 = scmp.eq.s32.totalorder %s28, 1
      %p65 = por %p63, %p64
      %p67 = scmp.ne.s32.totalorder %s52, %s66
      %p68 = scmp.eq.s32.totalorder %s28, 0
      %p69 = por %p67, %p68
      %s71 = sadd.s32 %s70, 1
      %p74 = scmp.eq.s32.totalorder %s22, 1
      %p75 = scmp.ne.s32.totalorder %s70, %s72
      %p76 = scmp.eq.s32.totalorder %s22, 0
      %p77 = por %p75, %p76
      %p78 = scmp.ne.s32.totalorder %s70, %s72
      %p79 = scmp.eq.s32.totalorder %s27, 1
      %p80 = por %p78, %p79
      %p81 = scmp.ne.s32.totalorder %s72, %s73
      %p82 = scmp.eq.s32.totalorder %s27, 0
      %p83 = por %p81, %p82
      %p84 = scmp.ne.s32.totalorder %s72, %s73
      %p85 = scmp.eq.s32.totalorder %s28, 1
      %p86 = por %p84, %p85
      %p88 = scmp.ne.s32.totalorder %s73, %s87
      %p89 = scmp.eq.s32.totalorder %s28, 0
      %p90 = por %p88, %p89
      %s91 = sld [smem:[#allocation4]]
      %s92 = sld [smem:[#allocation4 + $0x1]]
      %s93 = sld [smem:[#allocation4 + $0x2]]
      %s94 = sld [smem:[#allocation4 + $0x3]]
      %s95 = sadd.s32 %s91, %s30
      %s96 = sadd.s32 %s91, %s92
      %s97 = ssub.s32 %s96, 1
      %p98 = scmp.lt.s32.totalorder %s95, %s97
      %s99 = scalar_select %p98, %s95, %s97
      %s100 = sadd.s32 %s93, %s31
      %s101 = sadd.s32 %s93, %s94
      %s102 = ssub.s32 %s101, 1
      %p103 = scmp.lt.s32.totalorder %s100, %s102
      %s104 = scalar_select %p103, %s100, %s102
      %p105 = scmp.lt.s32.totalorder %s30, %s92
      %s106 = scalar_select %p105, %s104, %s102
      %s107 = sld [smem:[#allocation4]]
      %s108 = sld [smem:[#allocation4 + $0x1]]
      %s109 = sld [smem:[#allocation4 + $0x2]]
      %s110 = sld [smem:[#allocation4 + $0x3]]
      %s111 = sadd.s32 %s107, %s44
      %s112 = sadd.s32 %s107, %s108
      %s113 = ssub.s32 %s112, 1
      %p114 = scmp.lt.s32.totalorder %s111, %s113
      %s115 = scalar_select %p114, %s111, %s113
      %s116 = sadd.s32 %s109, %s40
      %s117 = sadd.s32 %s109, %s110
      %s118 = ssub.s32 %s117, 1
      %p119 = scmp.lt.s32.totalorder %s116, %s118
      %s120 = scalar_select %p119, %s116, %s118
      %p121 = scmp.lt.s32.totalorder %s44, %s108
      %s122 = scalar_select %p121, %s120, %s118
      %s123 = ssub.s32 %s29, %s48
      %s124 = ssub.s32 %s99, %s115
      %s125 = sor.u32 %s123, %s124
      %s126 = ssub.s32 %s106, %s122
      %s127 = sor.u32 %s125, %s126
      %p128 = scmp.eq.s32.totalorder %s127, 0
      %s130 = sadd.s32 %s129, 1
      %s131 = scalar_select %p128, %s129, %s130
      %p134 = pneg %p128
      %p135 = scmp.eq.s32.totalorder %s22, 1
      %p136 = por %p134, %p135
      %p137 = scmp.ne.s32.totalorder %s129, %s132
      %p138 = scmp.eq.s32.totalorder %s22, 0
      %p139 = por %p137, %p138
      %p140 = scmp.ne.s32.totalorder %s129, %s132
      %p141 = scmp.eq.s32.totalorder %s27, 1
      %p142 = por %p140, %p141
      %p143 = scmp.ne.s32.totalorder %s132, %s133
      %p144 = scmp.eq.s32.totalorder %s27, 0
      %p145 = por %p143, %p144
      %p146 = scmp.ne.s32.totalorder %s132, %s133
      %p147 = scmp.eq.s32.totalorder %s28, 1
      %p148 = por %p146, %p147
      %p150 = scmp.ne.s32.totalorder %s133, %s149
      %p151 = scmp.eq.s32.totalorder %s28, 0
      %p152 = por %p150, %p151
      %s153 = ssub.s32 %s29, %s48
      %p154 = scmp.eq.s32.totalorder %s153, 0
      %s156 = sadd.s32 %s155, 1
      %s157 = scalar_select %p154, %s155, %s156
      %p160 = pneg %p154
      %p161 = scmp.eq.s32.totalorder %s22, 1
      %p162 = por %p160, %p161
      %p163 = scmp.ne.s32.totalorder %s155, %s158
      %p164 = scmp.eq.s32.totalorder %s22, 0
      %p165 = por %p163, %p164
      %p166 = scmp.ne.s32.totalorder %s155, %s158
      %p167 = scmp.eq.s32.totalorder %s27, 1
      %p168 = por %p166, %p167
      %p169 = scmp.ne.s32.totalorder %s158, %s159
      %p170 = scmp.eq.s32.totalorder %s27, 0
      %p171 = por %p169, %p170
      %p172 = scmp.ne.s32.totalorder %s158, %s159
      %p173 = scmp.eq.s32.totalorder %s28, 1
      %p174 = por %p172, %p173
      %p176 = scmp.ne.s32.totalorder %s159, %s175
      %p177 = scmp.eq.s32.totalorder %s28, 0
      %p178 = por %p176, %p177
      %p179 = scmp.le.s32.totalorder 1, %s22
      %p180 = scmp.lt.s32.totalorder %s22, 3
      %p181 = pnand %p179, %p180
      %p182 = pneg %p181
      // Predicated region
      $region9: #{tpu_custom_call.1} parent=5 // pred_check
        _
      $region10: #{tpu_custom_call.1} parent=5 // pred_check_branch
        %184 = sbr.rel (%p181) target = $region12
      $region11: #{tpu_custom_call.1} parent=5 // pred_region
        %s185 = ssub.s32 %s22, 1
        // Predicated region
        $region13: #{tpu_custom_call.1} parent=11 // pred_check
          %p186 = pneg %p62
        $region14: #{tpu_custom_call.1} parent=11 // pred_check_branch
          %188 = sbr.rel (%p186) target = $region16
        $region15: #{tpu_custom_call.1} parent=11 // pred_region
          _
        $region16: #{tpu_custom_call.1} parent=11 // pred_fallthru
          _
        // Predicated region
        $region17: #{tpu_custom_call.1} parent=11 // pred_check
          %p189 = pneg %p83
        $region18: #{tpu_custom_call.1} parent=11 // pred_check_branch
          %191 = sbr.rel (%p189) target = $region20
        $region19: #{tpu_custom_call.1} parent=11 // pred_region
          _
        $region20: #{tpu_custom_call.1} parent=11 // pred_fallthru
          _
      $region12: #{tpu_custom_call.1} parent=5 // pred_fallthru
        _
      %p192 = scmp.lt.s32.totalorder %s22, 2
      // Predicated region
      $region21: #{tpu_custom_call.1} parent=5 // pred_check
        %p193 = pneg %p192
      $region22: #{tpu_custom_call.1} parent=5 // pred_check_branch
        %195 = sbr.rel (%p193) target = $region24
      $region23: #{tpu_custom_call.1} parent=5 // pred_region
        // Predicated region
        $region25: #{tpu_custom_call.1} parent=23 // pred_check
          %p196 = pneg %p139
        $region26: #{tpu_custom_call.1} parent=23 // pred_check_branch
          %198 = sbr.rel (%p196) target = $region28
        $region27: #{tpu_custom_call.1} parent=23 // pred_region
          %s199 = sand.u32 %s129, 1
          %s200 = scalar_lea.sflag [#allocation6], %s199
          %s201 = sand.u32 %s129, 1
          %s202 = smul.addr %s201, 32
          %s203 = scalar_lea.vmem [#allocation5], %s202
          %s204 = sld [smem:[#allocation4]]
          %s205 = sld [smem:[#allocation4 + $0x1]]
          %s206 = sld [smem:[#allocation4 + $0x2]]
          %s207 = sld [smem:[#allocation4 + $0x3]]
          %s208 = sadd.s32 %s204, %s30
          %s209 = sadd.s32 %s204, %s205
          %s210 = ssub.s32 %s209, 1
          %p211 = scmp.lt.s32.totalorder %s208, %s210
          %s212 = scalar_select %p211, %s208, %s210
          %s213 = sadd.s32 %s206, %s31
          %s214 = sadd.s32 %s206, %s207
          %s215 = ssub.s32 %s214, 1
          %p216 = scmp.lt.s32.totalorder %s213, %s215
          %s217 = scalar_select %p216, %s213, %s215
          %p218 = scmp.lt.s32.totalorder %s30, %s205
          %s219 = scalar_select %p218, %s217, %s215
          %s220 = smul.u32 2, %s29
          %s221 = smul.u32 2, %s212
          %s223 = ssub.s32 512, 512
          %224 = vsyncadd %s200, %s223
          %s225 = sadd.s32 %s219, %s221
          %s226 = smul.addr %s220, 2
          %s227 = sadd.s32 %s225, %s226
          %s228 = smul.addr %s227, 128
          %s229 = scalar_lea.hbm %s3, %s228
          %s230 = sshll.u32 %s203, 4
          %s231 = int_to_ptr.vmem [resolvable:$true] %s230
          %236 = dma.hbm_to_vmem [thread:$0]  %s229, 512, %s231, %s200, 128, 128, 8
        $region28: #{tpu_custom_call.1} parent=23 // pred_fallthru
          _
      $region24: #{tpu_custom_call.1} parent=5 // pred_fallthru
        _
      %p237 = scmp.le.s32.totalorder 1, %s22
      %p238 = scmp.lt.s32.totalorder %s22, 3
      %p239 = pnand %p237, %p238
      %p240 = pneg %p239
      // Predicated region
      $region29: #{tpu_custom_call.1} parent=5 // pred_check
        _
      $region30: #{tpu_custom_call.1} parent=5 // pred_check_branch
        %242 = sbr.rel (%p239) target = $region32
      $region31: #{tpu_custom_call.1} parent=5 // pred_region
        %s243 = ssub.s32 %s22, 1
        %s244 = sand.u32 %s132, 1
        %s245 = scalar_lea.sflag [#allocation6], %s244
        %s246 = sand.u32 %s132, 1
        %s247 = smul.addr %s246, 32
        %s248 = scalar_lea.vmem [#allocation5], %s247
        // Predicated region
        $region33: #{tpu_custom_call.1} parent=31 // pred_check
          %p249 = pneg %p145
        $region34: #{tpu_custom_call.1} parent=31 // pred_check_branch
          %251 = sbr.rel (%p249) target = $region36
        $region35: #{tpu_custom_call.1} parent=31 // pred_region
          %252 = dma.done %s245, 512
        $region36: #{tpu_custom_call.1} parent=31 // pred_fallthru
          _
        %p253 = pneg %p62
        %p254 = pneg %p59
        %p255 = pneg %p83
        %p256 = pneg %p80
        %s257 = sand.u32 %s132, 1
        %s258 = scalar_lea.sflag [#allocation6], %s257
        %s259 = sand.u32 %s132, 1
        %s260 = smul.addr %s259, 32
        %s261 = scalar_lea.vmem [#allocation5], %s260
        %p262 = pneg %p145
        %p263 = pneg %p142
        %p264 = pneg %p171
        %p265 = pneg %p168
        %s266 = sand.u32 %s158, 1
        %s267 = scalar_lea.sflag [#allocation7], %s266
        %s268 = sand.u32 %s158, 1
        %s269 = smul.addr %s268, 16
        %s270 = scalar_lea.vmem [#allocation8], %s269
        %s271 = sld [smem:[#allocation4]]
        %s272 = sld [smem:[#allocation4 + $0x1]]
        %s273 = sld [smem:[#allocation4 + $0x2]]
        %s274 = sld [smem:[#allocation4 + $0x3]]
        %s275 = sadd.s32 %s271, %s33
        %s276 = sadd.s32 %s271, %s272
        %s277 = ssub.s32 %s276, 1
        %p278 = scmp.lt.s32.totalorder %s275, %s277
        %s279 = scalar_select %p278, %s275, %s277
        %s280 = sadd.s32 %s273, %s34
        %s281 = sadd.s32 %s273, %s274
        %s282 = ssub.s32 %s281, 1
        %p283 = scmp.lt.s32.totalorder %s280, %s282
        %s284 = scalar_select %p283, %s280, %s282
        %p285 = scmp.lt.s32.totalorder %s33, %s272
        %s286 = scalar_select %p285, %s284, %s282
        %s287 = smul.u32 2, %s32
        %s288 = smul.u32 2, %s279
        %s289 = smul.u32 2, %s32
        %s290 = sld [smem:[#allocation4 + $0x1]]
        %s291 = sld [smem:[#allocation4 + $0x3]]
        %p292 = scmp.eq.s32.totalorder %s33, 0
        %p293 = scmp.eq.s32.totalorder %s34, 0
        %p294 = pnand %p292, %p293
        %p295 = pneg %p294
        // Predicated region
        $region37: #{tpu_custom_call.1} parent=31 // pred_check
          _
        $region38: #{tpu_custom_call.1} parent=31 // pred_check_branch
          %297 = sbr.rel (%p294) target = $region40
        $region39: #{tpu_custom_call.1} parent=31 // pred_region
          %vm298 = vcmask 64512
          %299 = vst.msk [vmem:[#allocation2] sm:$0xff] %vm298, 0.0
          %300 = vst.msk [vmem:[#allocation2 + $0x8] sm:$0xff] %vm298, 0.0
        $region40: #{tpu_custom_call.1} parent=31 // pred_fallthru
          _
        %p301 = scmp.lt.s32.totalorder %s33, %s290
        %p302 = scmp.lt.s32.totalorder %s34, %s291
        %p303 = pnand %p301, %p302
        %p304 = pneg %p303
        // Predicated region
        $region41: #{tpu_custom_call.1} parent=31 // pred_check
          _
        $region42: #{tpu_custom_call.1} parent=31 // pred_check_branch
          %306 = sbr.rel (%p303) target = $region44
        $region43: #{tpu_custom_call.1} parent=31 // pred_region
          %s307 = sld [smem:[#allocation4]]
          %s308 = sadd.s32 %s307, %s33
          %s309 = sadd.s32 %s307, %s290
          %s310 = ssub.s32 %s309, 1
          %p311 = scmp.lt.s32.totalorder %s308, %s310
          %s312 = scalar_select %p311, %s308, %s310
          %s313 = sld [smem:[#allocation4 + $0x2]]
          %s314 = sadd.s32 %s313, %s34
          %s315 = sadd.s32 %s313, %s291
          %s316 = ssub.s32 %s315, 1
          %p317 = scmp.lt.s32.totalorder %s314, %s316
          %s318 = scalar_select %p317, %s314, %s316
          %v319 = vld [vmem:[%s248] sm:$0xff]
          %v320 = vld [vmem:[%s248 + $0x8] sm:$0xff]
          %v321 = vld [vmem:[%s248 + $0x10] sm:$0xff]
          %v322 = vld [vmem:[%s248 + $0x18] sm:$0xff]
          %s323 = smul.u32 %s318, 16
          %s324 = scalar_lea.vmem %s2, %s323
          %v325 = vld [vmem:[%s324] sm:$0xff]
          %v326 = vld [vmem:[%s324 + $0x8] sm:$0xff]
          %vm327 = vcmask 130048
          %v329 = vsel %vm327, %v319, 0
          %v332 = vsel %vm327, %v320, 0
          %v335 = vsel %vm327, %v321, 0
          %v338 = vsel %vm327, %v322, 0
          %340 = vmatprep.subr.mxu0 0.0
          %341 = vmatpush1.msra.mxu0 0.0
          %342 = vmatprep.subr.mxu0 0.0
          %343 = vmatpush1.msra.mxu0 0.0
          %344 = vmatprep.subr.mxu0 0.0
          %345 = vmatpush1.msra.mxu0 0.0
          %346 = vmatprep.subr.mxu0 0.0
          %347 = vmatpush1.msra.mxu0 0.0
          %348 = vmatprep.subr.mxu0 0.0
          %349 = vmatpush1.msra.mxu0 0.0
          %350 = vmatprep.subr.mxu0 0.0
          %351 = vmatpush1.msra.mxu0 0.0
          %352 = vmatprep.subr.mxu0 0.0
          %353 = vmatpush1.msra.mxu0 0.0
          %354 = vmatprep.subr.mxu0 0.0
          %355 = vmatpush1.msra.mxu0 0.0
          %356 = vmatprep.subr.mxu0 0.0
          %357 = vmatpush1.msra.mxu0 0.0
          %358 = vmatprep.subr.mxu0 0.0
          %359 = vmatpush1.msra.mxu0 0.0
          %360 = vmatprep.subr.mxu0 0.0
          %361 = vmatpush1.msra.mxu0 0.0
          %362 = vmatprep.subr.mxu0 0.0
          %363 = vmatpush1.msra.mxu0 0.0
          %364 = vmatprep.subr.mxu0 0.0
          %365 = vmatpush1.msra.mxu0 0.0
          %366 = vmatprep.subr.mxu0 0.0
          %367 = vmatpush1.msra.mxu0 0.0
          %368 = vmatprep.subr.mxu0 0.0
          %369 = vmatpush1.msra.mxu0 %v326
          %370 = vmatprep.subr.mxu0 0.0
          %371 = vmatpush1.msra.mxu0 %v325
          %372 = vmatprep.subr.mxu0 0.0
          %373 = vmatpush2.msra.mxu0 0.0
          %374 = vmatprep.subr.mxu0 0.0
          %375 = vmatpush2.msra.mxu0 0.0
          %376 = vmatprep.subr.mxu0 0.0
          %377 = vmatpush2.msra.mxu0 0.0
          %378 = vmatprep.subr.mxu0 0.0
          %379 = vmatpush2.msra.mxu0 0.0
          %380 = vmatprep.subr.mxu0 0.0
          %381 = vmatpush2.msra.mxu0 0.0
          %382 = vmatprep.subr.mxu0 0.0
          %383 = vmatpush2.msra.mxu0 0.0
          %384 = vmatprep.subr.mxu0 0.0
          %385 = vmatpush2.msra.mxu0 0.0
          %386 = vmatprep.subr.mxu0 0.0
          %387 = vmatpush2.msra.mxu0 0.0
          %388 = vmatprep.subr.mxu0 0.0
          %389 = vmatpush2.msra.mxu0 0.0
          %390 = vmatprep.subr.mxu0 0.0
          %391 = vmatpush2.msra.mxu0 0.0
          %392 = vmatprep.subr.mxu0 0.0
          %393 = vmatpush2.msra.mxu0 0.0
          %394 = vmatprep.subr.mxu0 0.0
          %395 = vmatpush2.msra.mxu0 0.0
          %396 = vmatprep.subr.mxu0 0.0
          %397 = vmatpush2.msra.mxu0 0.0
          %398 = vmatprep.subr.mxu0 0.0
          %399 = vmatpush2.msra.mxu0 0.0
          %400 = vmatprep.subr.mxu0 0.0
          %401 = vmatpush2.msra.mxu0 0.0
          %402 = vmatprep.subr.mxu0 0.0
          %403 = vmatpush2.msra.mxu0 0.0
          %404 = vmatprep.mubr.f32.mxu0 0.0
          %405 = vmatmul.mubr.f32.gmra.mxu0 %v329
          %v406 = vpop.f32.mrf.mxu0
          %v407 = vadd.f32 0.0, %v406
          %v408 = vpop.f32.mrf.mxu0
          %409 = vmatprep.mubr.f32.mxu0 0.0
          %410 = vmatmul.mubr.f32.gmra.mxu0 %v332
          %v411 = vpop.f32.mrf.mxu0
          %v412 = vadd.f32 0.0, %v411
          %v413 = vpop.f32.mrf.mxu0
          %414 = vmatprep.mubr.f32.mxu0 0.0
          %415 = vmatmul.mubr.f32.gmra.mxu0 %v335
          %v416 = vpop.f32.mrf.mxu0
          %v417 = vadd.f32 0.0, %v416
          %v418 = vpop.f32.mrf.mxu0
          %419 = vmatprep.mubr.f32.mxu0 0.0
          %420 = vmatmul.mubr.f32.gmra.mxu0 %v338
          %v421 = vpop.f32.mrf.mxu0
          %v422 = vadd.f32 0.0, %v421
          %v423 = vpop.f32.mrf.mxu0
          %424 = vdwg.mxu0
          %s425 = smul.u32 %s312, 8
          %s426 = scalar_lea.vmem %s1, %s425
          %v427 = vld [vmem:[%s426] sm:$0xff]
          %v428 = vld [vmem:[#allocation2] sm:$0xff]
          %v429 = vld [vmem:[#allocation2 + $0x8] sm:$0xff]
          %v431 = vsel %vm327, %v427, 0
          %433 = vmatprep.subr.mxu0 0.0
          %434 = vmatpush1.msra.mxu0 0.0
          %435 = vmatprep.subr.mxu0 0.0
          %436 = vmatpush1.msra.mxu0 0.0
          %437 = vmatprep.subr.mxu0 0.0
          %438 = vmatpush1.msra.mxu0 0.0
          %439 = vmatprep.subr.mxu0 0.0
          %440 = vmatpush1.msra.mxu0 0.0
          %441 = vmatprep.subr.mxu0 0.0
          %442 = vmatpush1.msra.mxu0 0.0
          %443 = vmatprep.subr.mxu0 0.0
          %444 = vmatpush1.msra.mxu0 0.0
          %445 = vmatprep.subr.mxu0 0.0
          %446 = vmatpush1.msra.mxu0 0.0
          %447 = vmatprep.subr.mxu0 0.0
          %448 = vmatpush1.msra.mxu0 0.0
          %449 = vmatprep.subr.mxu0 0.0
          %450 = vmatpush1.msra.mxu0 0.0
          %451 = vmatprep.subr.mxu0 0.0
          %452 = vmatpush1.msra.mxu0 0.0
          %453 = vmatprep.subr.mxu0 0.0
          %454 = vmatpush1.msra.mxu0 0.0
          %455 = vmatprep.subr.mxu0 0.0
          %456 = vmatpush1.msra.mxu0 0.0
          %457 = vmatprep.subr.mxu0 0.0
          %458 = vmatpush1.msra.mxu0 0.0
          %459 = vmatprep.subr.mxu0 0.0
          %460 = vmatpush1.msra.mxu0 0.0
          %461 = vmatprep.subr.mxu0 0.0
          %462 = vmatpush1.msra.mxu0 %v412
          %463 = vmatprep.subr.mxu0 0.0
          %464 = vmatpush1.msra.mxu0 %v407
          %465 = vmatprep.subr.mxu0 0.0
          %466 = vmatpush2.msra.mxu0 0.0
          %467 = vmatprep.subr.mxu0 0.0
          %468 = vmatpush2.msra.mxu0 0.0
          %469 = vmatprep.subr.mxu0 0.0
          %470 = vmatpush2.msra.mxu0 0.0
          %471 = vmatprep.subr.mxu0 0.0
          %472 = vmatpush2.msra.mxu0 0.0
          %473 = vmatprep.subr.mxu0 0.0
          %474 = vmatpush2.msra.mxu0 0.0
          %475 = vmatprep.subr.mxu0 0.0
          %476 = vmatpush2.msra.mxu0 0.0
          %477 = vmatprep.subr.mxu0 0.0
          %478 = vmatpush2.msra.mxu0 0.0
          %479 = vmatprep.subr.mxu0 0.0
          %480 = vmatpush2.msra.mxu0 0.0
          %481 = vmatprep.subr.mxu0 0.0
          %482 = vmatpush2.msra.mxu0 0.0
          %483 = vmatprep.subr.mxu0 0.0
          %484 = vmatpush2.msra.mxu0 0.0
          %485 = vmatprep.subr.mxu0 0.0
          %486 = vmatpush2.msra.mxu0 0.0
          %487 = vmatprep.subr.mxu0 0.0
          %488 = vmatpush2.msra.mxu0 0.0
          %489 = vmatprep.subr.mxu0 0.0
          %490 = vmatpush2.msra.mxu0 0.0
          %491 = vmatprep.subr.mxu0 0.0
          %492 = vmatpush2.msra.mxu0 0.0
          %493 = vmatprep.subr.mxu0 0.0
          %494 = vmatpush2.msra.mxu0 0.0
          %495 = vmatprep.subr.mxu0 0.0
          %496 = vmatpush2.msra.mxu0 0.0
          %497 = vmatprep.mubr.f32.mxu0 0.0
          %498 = vmatmul.mubr.f32.gmra.mxu0 %v431
          %v499 = vpop.f32.mrf.mxu0
          %v500 = vadd.f32 0.0, %v499
          %v501 = vpop.f32.mrf.mxu0
          %502 = vdwg.mxu0
          %503 = vmatprep.subr.mxu0 0.0
          %504 = vmatpush1.msra.mxu0 0.0
          %505 = vmatprep.subr.mxu0 0.0
          %506 = vmatpush1.msra.mxu0 0.0
          %507 = vmatprep.subr.mxu0 0.0
          %508 = vmatpush1.msra.mxu0 0.0
          %509 = vmatprep.subr.mxu0 0.0
          %510 = vmatpush1.msra.mxu0 0.0
          %511 = vmatprep.subr.mxu0 0.0
          %512 = vmatpush1.msra.mxu0 0.0
          %513 = vmatprep.subr.mxu0 0.0
          %514 = vmatpush1.msra.mxu0 0.0
          %515 = vmatprep.subr.mxu0 0.0
          %516 = vmatpush1.msra.mxu0 0.0
          %517 = vmatprep.subr.mxu0 0.0
          %518 = vmatpush1.msra.mxu0 0.0
          %519 = vmatprep.subr.mxu0 0.0
          %520 = vmatpush1.msra.mxu0 0.0
          %521 = vmatprep.subr.mxu0 0.0
          %522 = vmatpush1.msra.mxu0 0.0
          %523 = vmatprep.subr.mxu0 0.0
          %524 = vmatpush1.msra.mxu0 0.0
          %525 = vmatprep.subr.mxu0 0.0
          %526 = vmatpush1.msra.mxu0 0.0
          %527 = vmatprep.subr.mxu0 0.0
          %528 = vmatpush1.msra.mxu0 0.0
          %529 = vmatprep.subr.mxu0 0.0
          %530 = vmatpush1.msra.mxu0 0.0
          %531 = vmatprep.subr.mxu0 0.0
          %532 = vmatpush1.msra.mxu0 %v422
          %533 = vmatprep.subr.mxu0 0.0
          %534 = vmatpush1.msra.mxu0 %v417
          %535 = vmatprep.subr.mxu0 0.0
          %536 = vmatpush2.msra.mxu0 0.0
          %537 = vmatprep.subr.mxu0 0.0
          %538 = vmatpush2.msra.mxu0 0.0
          %539 = vmatprep.subr.mxu0 0.0
          %540 = vmatpush2.msra.mxu0 0.0
          %541 = vmatprep.subr.mxu0 0.0
          %542 = vmatpush2.msra.mxu0 0.0
          %543 = vmatprep.subr.mxu0 0.0
          %544 = vmatpush2.msra.mxu0 0.0
          %545 = vmatprep.subr.mxu0 0.0
          %546 = vmatpush2.msra.mxu0 0.0
          %547 = vmatprep.subr.mxu0 0.0
          %548 = vmatpush2.msra.mxu0 0.0
          %549 = vmatprep.subr.mxu0 0.0
          %550 = vmatpush2.msra.mxu0 0.0
          %551 = vmatprep.subr.mxu0 0.0
          %552 = vmatpush2.msra.mxu0 0.0
          %553 = vmatprep.subr.mxu0 0.0
          %554 = vmatpush2.msra.mxu0 0.0
          %555 = vmatprep.subr.mxu0 0.0
          %556 = vmatpush2.msra.mxu0 0.0
          %557 = vmatprep.subr.mxu0 0.0
          %558 = vmatpush2.msra.mxu0 0.0
          %559 = vmatprep.subr.mxu0 0.0
          %560 = vmatpush2.msra.mxu0 0.0
          %561 = vmatprep.subr.mxu0 0.0
          %562 = vmatpush2.msra.mxu0 0.0
          %563 = vmatprep.subr.mxu0 0.0
          %564 = vmatpush2.msra.mxu0 0.0
          %565 = vmatprep.subr.mxu0 0.0
          %566 = vmatpush2.msra.mxu0 0.0
          %567 = vmatprep.mubr.f32.mxu0 0.0
          %568 = vmatmul.mubr.f32.gmra.mxu0 %v431
          %v569 = vpop.f32.mrf.mxu0
          %v570 = vadd.f32 0.0, %v569
          %v571 = vpop.f32.mrf.mxu0
          %572 = vdwg.mxu0
          %v573 = vadd.f32 %v428, %v500
          %v574 = vadd.f32 %v429, %v570
          %vm575 = vcmask 64512
          %576 = vst.msk [vmem:[#allocation2] sm:$0xff] %vm575, %v573
          %577 = vst.msk [vmem:[#allocation2 + $0x8] sm:$0xff] %vm575, %v574
        $region44: #{tpu_custom_call.1} parent=31 // pred_fallthru
          _
        // Predicated region
        $region45: #{tpu_custom_call.1} parent=31 // pred_check
          _
        $region46: #{tpu_custom_call.1} parent=31 // pred_check_branch
          %579 = sbr.rel (%p294) target = $region48
        $region47: #{tpu_custom_call.1} parent=31 // pred_region
          %v580 = vld [vmem:[#allocation2] sm:$0xff]
          %v581 = vld [vmem:[#allocation2 + $0x8] sm:$0xff]
          %vm582 = vcmask 64512
          %583 = vst.msk [vmem:[%s270] sm:$0xff] %vm582, %v580
          %584 = vst.msk [vmem:[%s270 + $0x8] sm:$0xff] %vm582, %v581
        $region48: #{tpu_custom_call.1} parent=31 // pred_fallthru
          _
        %s585 = sand.u32 %s158, 1
        %s586 = scalar_lea.sflag [#allocation7], %s585
        %s587 = sand.u32 %s158, 1
        %s588 = smul.addr %s587, 16
        %s589 = scalar_lea.vmem [#allocation8], %s588
        // Predicated region
        $region49: #{tpu_custom_call.1} parent=31 // pred_check
          %p590 = pneg %p168
        $region50: #{tpu_custom_call.1} parent=31 // pred_check_branch
          %592 = sbr.rel (%p590) target = $region52
        $region51: #{tpu_custom_call.1} parent=31 // pred_region
          %s593 = smul.u32 2, %s32
          %s595 = ssub.s32 256, 256
          %596 = vsyncadd %s586, %s595
          %s597 = smul.addr %s593, 128
          %s598 = scalar_lea.hbm %s4, %s597
          %s599 = sshll.u32 %s589, 4
          %s600 = int_to_ptr.vmem [resolvable:$true] %s599
          %605 = dma.vmem_to_hbm [thread:$0]  %s600, 256, %s598, %s586, 128, 128, 8
        $region52: #{tpu_custom_call.1} parent=31 // pred_fallthru
          _
      $region32: #{tpu_custom_call.1} parent=5 // pred_fallthru
        _
      %p606 = scmp.le.s32.totalorder 2, %s22
      // Predicated region
      $region53: #{tpu_custom_call.1} parent=5 // pred_check
        %p607 = pneg %p606
      $region54: #{tpu_custom_call.1} parent=5 // pred_check_branch
        %609 = sbr.rel (%p607) target = $region56
      $region55: #{tpu_custom_call.1} parent=5 // pred_region
        %s610 = ssub.s32 %s22, 2
        // Predicated region
        $region57: #{tpu_custom_call.1} parent=55 // pred_check
          %p611 = pneg %p174
        $region58: #{tpu_custom_call.1} parent=55 // pred_check_branch
          %613 = sbr.rel (%p611) target = $region60
        $region59: #{tpu_custom_call.1} parent=55 // pred_region
          %s614 = sand.u32 %s159, 1
          %s615 = scalar_lea.sflag [#allocation7], %s614
          %s616 = sand.u32 %s159, 1
          %s617 = smul.addr %s616, 16
          %s618 = scalar_lea.vmem [#allocation8], %s617
          %619 = dma.done %s615, 256
        $region60: #{tpu_custom_call.1} parent=55 // pred_fallthru
          _
      $region56: #{tpu_custom_call.1} parent=5 // pred_fallthru
        _
    $region6: #{tpu_custom_call.1} parent=1 // loop_footer
      %s26 = sadd.s32 1, %s22
    $region7: #{tpu_custom_call.1} parent=1 // loop_footer_branch
      %21 = sbr.rel target = $region3
    $region8: #{tpu_custom_call.1} parent=1 // loop_exit
      _
    %620 = vsyncpa [#allocation6], 1
    %s621 = scalar_lea.sflag [#allocation6], 1
    %622 = vsyncpa %s621, 1
    %623 = vsyncpa [#allocation7], 1
    %s624 = scalar_lea.sflag [#allocation7], 1
    %625 = vsyncpa %s624, 1

</llo_original>
